<compile_context>
chip_gen: v7x
topology: tpu7x:2x2x1
jax: 0.10.0
libtpu: 0.0.40
codegen_flags: <defaults>
</compile_context>

<pallas_src>
import math

import jax
import jax.numpy as jnp
from jax.experimental import pallas as pl
from jax.experimental.pallas import tpu as pltpu

NUM_MODELS = 4          # [densenet, inception, resnet, resnext] stack order
THRESHOLD = 0.5


def _fusion_kernel(x_ref, wm_ref, thr_ref, wf_ref, bf_ref, o_ref):
    """One pixel tile in channel-plane layout.

    x_ref  : (1, C, TS, 128) VMEM — C channel planes of a TS*128 pixel tile
    wm_ref : (C*4,) SMEM          — per-model head weights, row-major (c, m)
    thr_ref: (4,)   SMEM          — per-model bias-folded logit thresholds
    wf_ref : (4,)   SMEM          — FusionSystem weights
    bf_ref : (1,)   SMEM          — FusionSystem bias
    o_ref  : (1, 1, TS, 128) VMEM — fused probability per pixel (lane-dense)
    """
    C = x_ref.shape[1]
    fused = None
    for m in range(NUM_MODELS):
        # Per-model 1x1-conv head == scalar-weighted FMAs over channel planes
        # (tiny K/N GEMMs would waste the MXU and drag layout conversions).
        # Planes are read at point of use — no big slabs live across the loop.
        logit = x_ref[0, 0] * wm_ref[m]
        for c in range(1, C):
            logit = logit + x_ref[0, c] * wm_ref[c * NUM_MODELS + m]
        # sigmoid(logit + b_m) >= threshold  <=>  logit >= logit(t) - b_m
        # (bias folded into the threshold; binarize and fusion weight fused
        #  into a single select — no where(...,1,0) followed by a multiply).
        term = jnp.where(logit >= thr_ref[m], wf_ref[m], 0.0)
        fused = term if fused is None else fused + term
    fused = fused + bf_ref[0]

    # Final sigmoid: exp on the EUP + approx reciprocal on the EUP slot
    # (f32 divide would burn VALU slots on Newton refinement).
    o_ref[0, 0, :, :] = pl.reciprocal(1.0 + jnp.exp(-fused), approx=True)


def _cdiv(a, b):
    return -(-a // b)


def _round_up(x, m):
    return ((x + m - 1) // m) * m


def fusion_network_forward(x_nchw, w_models, b_models, w_fusion, b_fusion,
                           *, threshold=THRESHOLD, tile_rows=None,
                           vmem_limit_bytes=32 * 1024 * 1024):
    """x_nchw: [B, C, H, W] float32. Returns [B, 1, H, W] float32."""
    B, C, H, W = x_nchw.shape
    HW = H * W
    assert 0.0 < threshold < 1.0, "threshold must lie in (0, 1)"

    # Channel-plane layout straight from NCHW (free reshape — no transpose).
    x3d = x_nchw.reshape(B, C, HW)

    # Only unavoidable padding: H*W up to a lane multiple (128).  No round-up
    # to the tile size — the partial final pixel block is handled by Pallas.
    rows = _cdiv(HW, 128)
    hw_pad = rows * 128
    if hw_pad != HW:
        x3d = jnp.pad(x3d, ((0, 0), (0, 0), (0, hw_pad - HW)))
    x4d = x3d.reshape(B, C, rows, 128)

    # Tile sizing: TS sublanes x 128 lanes per block (lane-dense in & out).
    # Budget ~10 MiB for the double-buffered in+out blocks
    # (2 * (C+1) * TS * 128 * 4 B): safe on v5e's 16 MiB scoped default and
    # leaves headroom for elementwise temporaries on v7x (32 MiB scoped,
    # 64 MiB physical per TC); ts=2048 -> 4 MiB input block (>=85% roofline
    # regime).
    if tile_rows is None:
        budget = 10 * 1024 * 1024
        tile_rows = max(8, min(2048, (budget // (2 * (C + 1) * 128 * 4)) // 8 * 8))
    ts = min(tile_rows, rows)
    if ts < rows:
        ts = max(8, (ts // 8) * 8)
    # Megacore / pipelining: keep several pixel blocks in the grid so both
    # v7x TensorCores and the DMA/compute pipeline have work.
    min_blocks = 4 if B == 1 else 2
    if rows >= min_blocks * 8:
        ts = min(ts, _round_up(_cdiv(rows, min_blocks), 8))

    grid = (B, _cdiv(rows, ts))

    # Flatten the 25 parameters into small SMEM scalar tables; fold the
    # per-model head bias into the decision threshold.
    wm_flat = jnp.asarray(w_models, jnp.float32).reshape(C * NUM_MODELS)
    bm_flat = jnp.asarray(b_models, jnp.float32).reshape(NUM_MODELS)
    wf_flat = jnp.asarray(w_fusion, jnp.float32).reshape(NUM_MODELS)
    bf_flat = jnp.asarray(b_fusion, jnp.float32).reshape(1)
    logit_thresh = float(math.log(threshold / (1.0 - threshold)))
    thr_flat = (logit_thresh - bm_flat).astype(jnp.float32)

    out4d = pl.pallas_call(
        _fusion_kernel,
        out_shape=jax.ShapeDtypeStruct((B, 1, rows, 128), jnp.float32),
        grid_spec=pltpu.PrefetchScalarGridSpec(
            num_scalar_prefetch=0,
            grid=grid,
            in_specs=[
                pl.BlockSpec((1, C, ts, 128), lambda b, p: (b, 0, p, 0)),
                pl.BlockSpec(memory_space=pltpu.MemorySpace.SMEM),  # wm
                pl.BlockSpec(memory_space=pltpu.MemorySpace.SMEM),  # thresholds
                pl.BlockSpec(memory_space=pltpu.MemorySpace.SMEM),  # wf
                pl.BlockSpec(memory_space=pltpu.MemorySpace.SMEM),  # bf
            ],
            out_specs=pl.BlockSpec((1, 1, ts, 128), lambda b, p: (b, 0, p, 0)),
        ),
        compiler_params=pltpu.CompilerParams(
            dimension_semantics=("parallel", "parallel"),
            vmem_limit_bytes=vmem_limit_bytes),
    )(x4d, wm_flat, thr_flat, wf_flat, bf_flat)

    out = out4d.reshape(B, 1, hw_pad)
    if hw_pad != HW:
        out = out[:, :, :HW]
    return out.reshape(B, 1, H, W)


def _reference(x_nchw, w_models, b_models, w_fusion, b_fusion,
               threshold=THRESHOLD):
    """Pure-JAX reference matching the PyTorch forward semantics."""
    B, C, H, W = x_nchw.shape
    x2d = jnp.transpose(x_nchw, (0, 2, 3, 1)).reshape(B * H * W, C)
    logits = x2d @ w_models + b_models.reshape(1, NUM_MODELS)
    probs = jax.nn.sigmoid(logits)
    binarized = jnp.where(probs >= threshold, 1.0, 0.0)
    fused = binarized @ w_fusion.reshape(NUM_MODELS, 1) + b_fusion.reshape(1, 1)
    out = jax.nn.sigmoid(fused)
    return jnp.transpose(out.reshape(B, H, W, 1), (0, 3, 1, 2))


if __name__ == "__main__":
    key = jax.random.PRNGKey(0)
    k_x, k_wm, k_bm, k_wf, k_bf = jax.random.split(key, 5)

    B, C, H, W = 2, 4, 16, 16
    x = jax.random.normal(k_x, (B, C, H, W), dtype=jnp.float32)

    # Deterministic synthetic parameters (columns: densenet, inception,
    # resnet, resnext — matching the torch.stack order).
    w_models = jax.random.normal(k_wm, (C, NUM_MODELS), dtype=jnp.float32) * 0.5
    b_models = jax.random.normal(k_bm, (1, NUM_MODELS), dtype=jnp.float32) * 0.1
    w_fusion = jax.random.normal(k_wf, (NUM_MODELS, 1), dtype=jnp.float32) * 0.5
    b_fusion = jax.random.normal(k_bf, (1, 1), dtype=jnp.float32) * 0.1

    out = fusion_network_forward(x, w_models, b_models, w_fusion, b_fusion)
    out = jax.block_until_ready(out)

    ref = _reference(x, w_models, b_models, w_fusion, b_fusion)
    assert out.shape == (B, 1, H, W), out.shape
    # Tolerance is looser than 1e-5 because the final sigmoid uses the EUP
    # approximate reciprocal; output is a probability, so 2e-3 is ample.
    max_err = float(jnp.max(jnp.abs(out - ref)))
    assert jnp.allclose(out, ref, atol=2e-3, rtol=2e-3), max_err

    print("KERNEL_OK")
</pallas_src>

<mosaic_0001>
module attributes {stable_mosaic.version = 11 : i64} {
  func.func @_fusion_kernel(%arg0: i32, %arg1: i32, %arg2: memref<1x4x2x128xf32, #tpu.memory_space<vmem>>, %arg3: memref<16xf32, #tpu.memory_space<smem>>, %arg4: memref<4xf32, #tpu.memory_space<smem>>, %arg5: memref<4xf32, #tpu.memory_space<smem>>, %arg6: memref<1xf32, #tpu.memory_space<smem>>, %arg7: memref<1x1x2x128xf32, #tpu.memory_space<vmem>>) attributes {dimension_semantics = [#tpu.dimension_semantics<parallel>, #tpu.dimension_semantics<parallel>], iteration_bounds = array<i64: 2, 1>, scalar_prefetch = 0 : i64, scratch_operands = 0 : i64, tpu.core_type = #tpu.core_type<tc>, window_params = [{transform_indices = @transform_0, window_bounds = array<i64: 1, 4, 2, 128>}, {transform_indices = @transform_1, window_bounds = array<i64: 16>}, {transform_indices = @transform_2, window_bounds = array<i64: 4>}, {transform_indices = @transform_3, window_bounds = array<i64: 4>}, {transform_indices = @transform_4, window_bounds = array<i64: 1>}, {transform_indices = @transform_5, window_bounds = array<i64: 1, 1, 2, 128>}]} {
    %c0 = arith.constant 0 : index
    %c0_0 = arith.constant 0 : index
    %c0_1 = arith.constant 0 : index
    %c0_2 = arith.constant 0 : index
    %0 = vector.load %arg2[%c0, %c0_0, %c0_1, %c0_2] : memref<1x4x2x128xf32, #tpu.memory_space<vmem>>, vector<1x1x2x128xf32>
    %1 = vector.shape_cast %0 : vector<1x1x2x128xf32> to vector<2x128xf32>
    %c0_3 = arith.constant 0 : index
    %2 = memref.load %arg3[%c0_3] : memref<16xf32, #tpu.memory_space<smem>>
    %3 = vector.broadcast %2 : f32 to vector<2x128xf32>
    %4 = arith.mulf %1, %3 : vector<2x128xf32>
    %c0_4 = arith.constant 0 : index
    %c1 = arith.constant 1 : index
    %c0_5 = arith.constant 0 : index
    %c0_6 = arith.constant 0 : index
    %5 = vector.load %arg2[%c0_4, %c1, %c0_5, %c0_6] : memref<1x4x2x128xf32, #tpu.memory_space<vmem>>, vector<1x1x2x128xf32>
    %6 = vector.shape_cast %5 : vector<1x1x2x128xf32> to vector<2x128xf32>
    %c4 = arith.constant 4 : index
    %7 = memref.load %arg3[%c4] : memref<16xf32, #tpu.memory_space<smem>>
    %8 = vector.broadcast %7 : f32 to vector<2x128xf32>
    %9 = arith.mulf %6, %8 : vector<2x128xf32>
    %10 = arith.addf %4, %9 : vector<2x128xf32>
    %c0_7 = arith.constant 0 : index
    %c2 = arith.constant 2 : index
    %c0_8 = arith.constant 0 : index
    %c0_9 = arith.constant 0 : index
    %11 = vector.load %arg2[%c0_7, %c2, %c0_8, %c0_9] : memref<1x4x2x128xf32, #tpu.memory_space<vmem>>, vector<1x1x2x128xf32>
    %12 = vector.shape_cast %11 : vector<1x1x2x128xf32> to vector<2x128xf32>
    %c8 = arith.constant 8 : index
    %13 = memref.load %arg3[%c8] : memref<16xf32, #tpu.memory_space<smem>>
    %14 = vector.broadcast %13 : f32 to vector<2x128xf32>
    %15 = arith.mulf %12, %14 : vector<2x128xf32>
    %16 = arith.addf %10, %15 : vector<2x128xf32>
    %c0_10 = arith.constant 0 : index
    %c3 = arith.constant 3 : index
    %c0_11 = arith.constant 0 : index
    %c0_12 = arith.constant 0 : index
    %17 = vector.load %arg2[%c0_10, %c3, %c0_11, %c0_12] : memref<1x4x2x128xf32, #tpu.memory_space<vmem>>, vector<1x1x2x128xf32>
    %18 = vector.shape_cast %17 : vector<1x1x2x128xf32> to vector<2x128xf32>
    %c12 = arith.constant 12 : index
    %19 = memref.load %arg3[%c12] : memref<16xf32, #tpu.memory_space<smem>>
    %20 = vector.broadcast %19 : f32 to vector<2x128xf32>
    %21 = arith.mulf %18, %20 : vector<2x128xf32>
    %22 = arith.addf %16, %21 : vector<2x128xf32>
    %c0_13 = arith.constant 0 : index
    %23 = memref.load %arg4[%c0_13] : memref<4xf32, #tpu.memory_space<smem>>
    %24 = vector.broadcast %23 : f32 to vector<2x128xf32>
    %25 = arith.cmpf oge, %22, %24 : vector<2x128xf32>
    %c0_14 = arith.constant 0 : index
    %26 = memref.load %arg5[%c0_14] : memref<4xf32, #tpu.memory_space<smem>>
    %cst = arith.constant 0.000000e+00 : f32
    %27 = vector.broadcast %26 : f32 to vector<2x128xf32>
    %28 = vector.broadcast %cst : f32 to vector<2x128xf32>
    %29 = arith.select %25, %27, %28 : vector<2x128xi1>, vector<2x128xf32>
    %c0_15 = arith.constant 0 : index
    %c0_16 = arith.constant 0 : index
    %c0_17 = arith.constant 0 : index
    %c0_18 = arith.constant 0 : index
    %30 = vector.load %arg2[%c0_15, %c0_16, %c0_17, %c0_18] : memref<1x4x2x128xf32, #tpu.memory_space<vmem>>, vector<1x1x2x128xf32>
    %31 = vector.shape_cast %30 : vector<1x1x2x128xf32> to vector<2x128xf32>
    %c1_19 = arith.constant 1 : index
    %32 = memref.load %arg3[%c1_19] : memref<16xf32, #tpu.memory_space<smem>>
    %33 = vector.broadcast %32 : f32 to vector<2x128xf32>
    %34 = arith.mulf %31, %33 : vector<2x128xf32>
    %c0_20 = arith.constant 0 : index
    %c1_21 = arith.constant 1 : index
    %c0_22 = arith.constant 0 : index
    %c0_23 = arith.constant 0 : index
    %35 = vector.load %arg2[%c0_20, %c1_21, %c0_22, %c0_23] : memref<1x4x2x128xf32, #tpu.memory_space<vmem>>, vector<1x1x2x128xf32>
    %36 = vector.shape_cast %35 : vector<1x1x2x128xf32> to vector<2x128xf32>
    %c5 = arith.constant 5 : index
    %37 = memref.load %arg3[%c5] : memref<16xf32, #tpu.memory_space<smem>>
    %38 = vector.broadcast %37 : f32 to vector<2x128xf32>
    %39 = arith.mulf %36, %38 : vector<2x128xf32>
    %40 = arith.addf %34, %39 : vector<2x128xf32>
    %c0_24 = arith.constant 0 : index
    %c2_25 = arith.constant 2 : index
    %c0_26 = arith.constant 0 : index
    %c0_27 = arith.constant 0 : index
    %41 = vector.load %arg2[%c0_24, %c2_25, %c0_26, %c0_27] : memref<1x4x2x128xf32, #tpu.memory_space<vmem>>, vector<1x1x2x128xf32>
    %42 = vector.shape_cast %41 : vector<1x1x2x128xf32> to vector<2x128xf32>
    %c9 = arith.constant 9 : index
    %43 = memref.load %arg3[%c9] : memref<16xf32, #tpu.memory_space<smem>>
    %44 = vector.broadcast %43 : f32 to vector<2x128xf32>
    %45 = arith.mulf %42, %44 : vector<2x128xf32>
    %46 = arith.addf %40, %45 : vector<2x128xf32>
    %c0_28 = arith.constant 0 : index
    %c3_29 = arith.constant 3 : index
    %c0_30 = arith.constant 0 : index
    %c0_31 = arith.constant 0 : index
    %47 = vector.load %arg2[%c0_28, %c3_29, %c0_30, %c0_31] : memref<1x4x2x128xf32, #tpu.memory_space<vmem>>, vector<1x1x2x128xf32>
    %48 = vector.shape_cast %47 : vector<1x1x2x128xf32> to vector<2x128xf32>
    %c13 = arith.constant 13 : index
    %49 = memref.load %arg3[%c13] : memref<16xf32, #tpu.memory_space<smem>>
    %50 = vector.broadcast %49 : f32 to vector<2x128xf32>
    %51 = arith.mulf %48, %50 : vector<2x128xf32>
    %52 = arith.addf %46, %51 : vector<2x128xf32>
    %c1_32 = arith.constant 1 : index
    %53 = memref.load %arg4[%c1_32] : memref<4xf32, #tpu.memory_space<smem>>
    %54 = vector.broadcast %53 : f32 to vector<2x128xf32>
    %55 = arith.cmpf oge, %52, %54 : vector<2x128xf32>
    %c1_33 = arith.constant 1 : index
    %56 = memref.load %arg5[%c1_33] : memref<4xf32, #tpu.memory_space<smem>>
    %cst_34 = arith.constant 0.000000e+00 : f32
    %57 = vector.broadcast %56 : f32 to vector<2x128xf32>
    %58 = vector.broadcast %cst_34 : f32 to vector<2x128xf32>
    %59 = arith.select %55, %57, %58 : vector<2x128xi1>, vector<2x128xf32>
    %60 = arith.addf %29, %59 : vector<2x128xf32>
    %c0_35 = arith.constant 0 : index
    %c0_36 = arith.constant 0 : index
    %c0_37 = arith.constant 0 : index
    %c0_38 = arith.constant 0 : index
    %61 = vector.load %arg2[%c0_35, %c0_36, %c0_37, %c0_38] : memref<1x4x2x128xf32, #tpu.memory_space<vmem>>, vector<1x1x2x128xf32>
    %62 = vector.shape_cast %61 : vector<1x1x2x128xf32> to vector<2x128xf32>
    %c2_39 = arith.constant 2 : index
    %63 = memref.load %arg3[%c2_39] : memref<16xf32, #tpu.memory_space<smem>>
    %64 = vector.broadcast %63 : f32 to vector<2x128xf32>
    %65 = arith.mulf %62, %64 : vector<2x128xf32>
    %c0_40 = arith.constant 0 : index
    %c1_41 = arith.constant 1 : index
    %c0_42 = arith.constant 0 : index
    %c0_43 = arith.constant 0 : index
    %66 = vector.load %arg2[%c0_40, %c1_41, %c0_42, %c0_43] : memref<1x4x2x128xf32, #tpu.memory_space<vmem>>, vector<1x1x2x128xf32>
    %67 = vector.shape_cast %66 : vector<1x1x2x128xf32> to vector<2x128xf32>
    %c6 = arith.constant 6 : index
    %68 = memref.load %arg3[%c6] : memref<16xf32, #tpu.memory_space<smem>>
    %69 = vector.broadcast %68 : f32 to vector<2x128xf32>
    %70 = arith.mulf %67, %69 : vector<2x128xf32>
    %71 = arith.addf %65, %70 : vector<2x128xf32>
    %c0_44 = arith.constant 0 : index
    %c2_45 = arith.constant 2 : index
    %c0_46 = arith.constant 0 : index
    %c0_47 = arith.constant 0 : index
    %72 = vector.load %arg2[%c0_44, %c2_45, %c0_46, %c0_47] : memref<1x4x2x128xf32, #tpu.memory_space<vmem>>, vector<1x1x2x128xf32>
    %73 = vector.shape_cast %72 : vector<1x1x2x128xf32> to vector<2x128xf32>
    %c10 = arith.constant 10 : index
    %74 = memref.load %arg3[%c10] : memref<16xf32, #tpu.memory_space<smem>>
    %75 = vector.broadcast %74 : f32 to vector<2x128xf32>
    %76 = arith.mulf %73, %75 : vector<2x128xf32>
    %77 = arith.addf %71, %76 : vector<2x128xf32>
    %c0_48 = arith.constant 0 : index
    %c3_49 = arith.constant 3 : index
    %c0_50 = arith.constant 0 : index
    %c0_51 = arith.constant 0 : index
    %78 = vector.load %arg2[%c0_48, %c3_49, %c0_50, %c0_51] : memref<1x4x2x128xf32, #tpu.memory_space<vmem>>, vector<1x1x2x128xf32>
    %79 = vector.shape_cast %78 : vector<1x1x2x128xf32> to vector<2x128xf32>
    %c14 = arith.constant 14 : index
    %80 = memref.load %arg3[%c14] : memref<16xf32, #tpu.memory_space<smem>>
    %81 = vector.broadcast %80 : f32 to vector<2x128xf32>
    %82 = arith.mulf %79, %81 : vector<2x128xf32>
    %83 = arith.addf %77, %82 : vector<2x128xf32>
    %c2_52 = arith.constant 2 : index
    %84 = memref.load %arg4[%c2_52] : memref<4xf32, #tpu.memory_space<smem>>
    %85 = vector.broadcast %84 : f32 to vector<2x128xf32>
    %86 = arith.cmpf oge, %83, %85 : vector<2x128xf32>
    %c2_53 = arith.constant 2 : index
    %87 = memref.load %arg5[%c2_53] : memref<4xf32, #tpu.memory_space<smem>>
    %cst_54 = arith.constant 0.000000e+00 : f32
    %88 = vector.broadcast %87 : f32 to vector<2x128xf32>
    %89 = vector.broadcast %cst_54 : f32 to vector<2x128xf32>
    %90 = arith.select %86, %88, %89 : vector<2x128xi1>, vector<2x128xf32>
    %91 = arith.addf %60, %90 : vector<2x128xf32>
    %c0_55 = arith.constant 0 : index
    %c0_56 = arith.constant 0 : index
    %c0_57 = arith.constant 0 : index
    %c0_58 = arith.constant 0 : index
    %92 = vector.load %arg2[%c0_55, %c0_56, %c0_57, %c0_58] : memref<1x4x2x128xf32, #tpu.memory_space<vmem>>, vector<1x1x2x128xf32>
    %93 = vector.shape_cast %92 : vector<1x1x2x128xf32> to vector<2x128xf32>
    %c3_59 = arith.constant 3 : index
    %94 = memref.load %arg3[%c3_59] : memref<16xf32, #tpu.memory_space<smem>>
    %95 = vector.broadcast %94 : f32 to vector<2x128xf32>
    %96 = arith.mulf %93, %95 : vector<2x128xf32>
    %c0_60 = arith.constant 0 : index
    %c1_61 = arith.constant 1 : index
    %c0_62 = arith.constant 0 : index
    %c0_63 = arith.constant 0 : index
    %97 = vector.load %arg2[%c0_60, %c1_61, %c0_62, %c0_63] : memref<1x4x2x128xf32, #tpu.memory_space<vmem>>, vector<1x1x2x128xf32>
    %98 = vector.shape_cast %97 : vector<1x1x2x128xf32> to vector<2x128xf32>
    %c7 = arith.constant 7 : index
    %99 = memref.load %arg3[%c7] : memref<16xf32, #tpu.memory_space<smem>>
    %100 = vector.broadcast %99 : f32 to vector<2x128xf32>
    %101 = arith.mulf %98, %100 : vector<2x128xf32>
    %102 = arith.addf %96, %101 : vector<2x128xf32>
    %c0_64 = arith.constant 0 : index
    %c2_65 = arith.constant 2 : index
    %c0_66 = arith.constant 0 : index
    %c0_67 = arith.constant 0 : index
    %103 = vector.load %arg2[%c0_64, %c2_65, %c0_66, %c0_67] : memref<1x4x2x128xf32, #tpu.memory_space<vmem>>, vector<1x1x2x128xf32>
    %104 = vector.shape_cast %103 : vector<1x1x2x128xf32> to vector<2x128xf32>
    %c11 = arith.constant 11 : index
    %105 = memref.load %arg3[%c11] : memref<16xf32, #tpu.memory_space<smem>>
    %106 = vector.broadcast %105 : f32 to vector<2x128xf32>
    %107 = arith.mulf %104, %106 : vector<2x128xf32>
    %108 = arith.addf %102, %107 : vector<2x128xf32>
    %c0_68 = arith.constant 0 : index
    %c3_69 = arith.constant 3 : index
    %c0_70 = arith.constant 0 : index
    %c0_71 = arith.constant 0 : index
    %109 = vector.load %arg2[%c0_68, %c3_69, %c0_70, %c0_71] : memref<1x4x2x128xf32, #tpu.memory_space<vmem>>, vector<1x1x2x128xf32>
    %110 = vector.shape_cast %109 : vector<1x1x2x128xf32> to vector<2x128xf32>
    %c15 = arith.constant 15 : index
    %111 = memref.load %arg3[%c15] : memref<16xf32, #tpu.memory_space<smem>>
    %112 = vector.broadcast %111 : f32 to vector<2x128xf32>
    %113 = arith.mulf %110, %112 : vector<2x128xf32>
    %114 = arith.addf %108, %113 : vector<2x128xf32>
    %c3_72 = arith.constant 3 : index
    %115 = memref.load %arg4[%c3_72] : memref<4xf32, #tpu.memory_space<smem>>
    %116 = vector.broadcast %115 : f32 to vector<2x128xf32>
    %117 = arith.cmpf oge, %114, %116 : vector<2x128xf32>
    %c3_73 = arith.constant 3 : index
    %118 = memref.load %arg5[%c3_73] : memref<4xf32, #tpu.memory_space<smem>>
    %cst_74 = arith.constant 0.000000e+00 : f32
    %119 = vector.broadcast %118 : f32 to vector<2x128xf32>
    %120 = vector.broadcast %cst_74 : f32 to vector<2x128xf32>
    %121 = arith.select %117, %119, %120 : vector<2x128xi1>, vector<2x128xf32>
    %122 = arith.addf %91, %121 : vector<2x128xf32>
    %c0_75 = arith.constant 0 : index
    %123 = memref.load %arg6[%c0_75] : memref<1xf32, #tpu.memory_space<smem>>
    %124 = vector.broadcast %123 : f32 to vector<2x128xf32>
    %125 = arith.addf %122, %124 : vector<2x128xf32>
    %cst_76 = arith.constant 0.000000e+00 : f32
    %126 = vector.broadcast %cst_76 : f32 to vector<2x128xf32>
    %127 = arith.subf %126, %125 : vector<2x128xf32>
    %128 = math.exp %127 : vector<2x128xf32>
    %cst_77 = arith.constant 1.000000e+00 : f32
    %129 = vector.broadcast %cst_77 : f32 to vector<2x128xf32>
    %130 = arith.addf %129, %128 : vector<2x128xf32>
    %131 = tpu.reciprocal %130 {approx = true} : vector<2x128xf32> -> vector<2x128xf32>
    %c0_78 = arith.constant 0 : index
    %c0_79 = arith.constant 0 : index
    %c0_80 = arith.constant 0 : index
    %c0_81 = arith.constant 0 : index
    %132 = vector.load %arg7[%c0_78, %c0_79, %c0_80, %c0_81] : memref<1x1x2x128xf32, #tpu.memory_space<vmem>>, vector<1x1x2x128xf32>
    %133 = vector.shape_cast %132 : vector<1x1x2x128xf32> to vector<2x128xf32>
    %134 = vector.shape_cast %131 : vector<2x128xf32> to vector<1x1x2x128xf32>
    tpu.vector_store %arg7[%c0_78, %c0_79, %c0_80, %c0_81], %134 {strides = array<i32>} : memref<1x1x2x128xf32, #tpu.memory_space<vmem>>, vector<1x1x2x128xf32>,
    return
  }
  func.func @transform_0(%arg0: i32, %arg1: i32) -> (i32, i32, i32, i32) {
    %c0_i32 = arith.constant 0 : i32
    %c0_i32_0 = arith.constant 0 : i32
    %c0_i32_1 = arith.constant 0 : i32
    return %arg0, %c0_i32, %arg1, %c0_i32_0 : i32, i32, i32, i32
  }
  func.func @transform_1(%arg0: i32, %arg1: i32) -> i32 {
    %c0_i32 = arith.constant 0 : i32
    %c0_i32_0 = arith.constant 0 : i32
    return %c0_i32 : i32
  }
  func.func @transform_2(%arg0: i32, %arg1: i32) -> i32 {
    %c0_i32 = arith.constant 0 : i32
    %c0_i32_0 = arith.constant 0 : i32
    return %c0_i32 : i32
  }
  func.func @transform_3(%arg0: i32, %arg1: i32) -> i32 {
    %c0_i32 = arith.constant 0 : i32
    %c0_i32_0 = arith.constant 0 : i32
    return %c0_i32 : i32
  }
  func.func @transform_4(%arg0: i32, %arg1: i32) -> i32 {
    %c0_i32 = arith.constant 0 : i32
    %c0_i32_0 = arith.constant 0 : i32
    return %c0_i32 : i32
  }
  func.func @transform_5(%arg0: i32, %arg1: i32) -> (i32, i32, i32, i32) {
    %c0_i32 = arith.constant 0 : i32
    %c0_i32_0 = arith.constant 0 : i32
    %c0_i32_1 = arith.constant 0 : i32
    return %arg0, %c0_i32, %arg1, %c0_i32_0 : i32, i32, i32, i32
  }
}

</mosaic_0001>

<llo_original>
// kernel: tpu_custom_call.1
$region0: #{tpu_custom_call.1}
  #allocation0 [shape = 'u32[]', space=smem, size = 0x4, offset = 0x4, fixed_abs, tag = 'smem constant byte address 0x4 - core index']
  #allocation1 [shape = 'u32[144,128]{1,0:T(1,128)}', space=vmem, size = 0x12000, scoped, tag = 'internal scratch']
  #allocation2 [shape = 'f32[1]{0:T(128)S(6)}', space=smem, size = 0x200, scoped, tag = 'scoped memory for tpu_custom_call.1']
  %s0 = inlined_call_operand.hbm [shape: f32[2,4,2,128], index: 0, kind: input, shape index: {}]
  %s1 = inlined_call_operand.vmem [shape: f32[16], index: 1, kind: input, shape index: {}]
  %s2 = inlined_call_operand.vmem [shape: f32[4], index: 2, kind: input, shape index: {}]
  %s3 = inlined_call_operand.vmem [shape: f32[4], index: 3, kind: input, shape index: {}]
  %s4 = inlined_call_operand.<no memory space> [shape: f32[1], index: 4, kind: input, shape index: {}]
  %s5 = inlined_call_operand.hbm [shape: f32[2,1,2,128], index: 5, kind: output, shape index: {}]
  %s6 = sld [smem:[#allocation0]]
  $region69: #{tpu_custom_call.1} parent=0
    _
  %s8 = ssub.s32 1, %s6
  %s9 = scalar_select 0, %s8, %s6
  %10 = sst [smem:[#allocation2]] %s4
  $region1: #{tpu_custom_call.1} parent=0
    #allocation3 [shape = 'u8[8192]{0}', space=vmem, size = 0x2000, scoped, tag = 'input window, operand 0']
    #allocation4 [shape = 's32[2]{0}', space=sflag, size = 0x8, scoped, tag = 'scoped memory for tpu_custom_call.1']
    #allocation5 [shape = 's32[2]{0}', space=sflag, size = 0x8, scoped, tag = 'scoped memory for tpu_custom_call.1']
    #allocation6 [shape = 's32[2]{0}', space=sflag, size = 0x8, scoped, tag = 'scoped memory for tpu_custom_call.1']
    #allocation7 [shape = 'u8[512]{0}', space=smem, size = 0x200, scoped, tag = 'input window, operand 1, single buffered']
    #allocation8 [shape = 'u8[512]{0}', space=smem, size = 0x200, scoped, tag = 'input window, operand 2, single buffered']
    #allocation9 [shape = 's32[1]{0}', space=sflag, size = 0x4, scoped, tag = 'scoped memory for tpu_custom_call.1']
    #allocation10 [shape = 'u8[512]{0}', space=smem, size = 0x200, scoped, tag = 'input window, operand 3, single buffered']
    #allocation11 [shape = 'u8[2048]{0}', space=vmem, size = 0x800, scoped, tag = 'output window, operand 0']
    %11 = vsyncpa [#allocation4], 0
    %s12 = scalar_lea.sflag [#allocation4], 1
    %13 = vsyncpa %s12, 0
    %14 = vsyncpa [#allocation6], 0
    %15 = vsyncpa [#allocation9], 0
    %16 = vsyncpa [#allocation5], 0
    %s17 = scalar_lea.sflag [#allocation5], 1
    %18 = vsyncpa %s17, 0
    loop: start=0, step=1, limit=4
    $region2: #{tpu_custom_call.1} parent=1 // loop_pre_header
      _
    $region3: #{tpu_custom_call.1} parent=1 // loop_header
      %s20 = sphi 0, %s24
      %p21 = scmp.ge.s32.totalorder %s20, 4
      %s27 = sphi 0, %s39
      %s28 = sphi 0, %s35
      %s29 = sphi 0, %s27
      %s30 = sphi 0, %s28
      %s31 = sphi 0, %s29
      %s32 = sphi 0, %s30
      %s44 = sphi 0, %s46
      %s47 = sphi 0, %s44
      %s48 = sphi 0, %s47
      %s64 = sphi 0, %s48
      %s68 = sphi 0, %s68
      %s70 = sphi 0, %s68
      %s71 = sphi 0, %s70
      %s85 = sphi 0, %s71
      %s89 = sphi 0, %s89
      %s91 = sphi 0, %s89
      %s92 = sphi 0, %s91
      %s106 = sphi 0, %s92
      %s110 = sphi 0, %s110
      %s112 = sphi 0, %s110
      %s113 = sphi 0, %s112
      %s127 = sphi 0, %s113
      %s131 = sphi 0, %s131
      %s133 = sphi 0, %s131
      %s134 = sphi 0, %s133
      %s148 = sphi 0, %s134
      %s156 = sphi 0, %s158
      %s159 = sphi 0, %s156
      %s160 = sphi 0, %s159
      %s176 = sphi 0, %s160
    $region4: #{tpu_custom_call.1} parent=1 // loop_header_branch
      %23 = sbr.rel (%p21) target = $region8
    $region5: #{tpu_custom_call.1} parent=1 // loop_body
      %s25 = ssub.s32 %s20, 1
      %s26 = ssub.s32 %s20, 2
      %s33 = sadd.s32 1, %s28
      %p34 = scmp.ge.s32.totalorder %s33, 1
      %s35 = scalar_select %p34, 0, %s33
      %s36 = sadd.s32 1, %s27
      %s37 = scalar_select %p34, %s36, %s27
      %p38 = scmp.ge.s32.totalorder %s37, 2
      %s39 = scalar_select %p38, 0, %s37
      %s40 = ssub.s32 %s27, %s39
      %s41 = ssub.s32 %s28, %s35
      %s42 = sor.u32 %s40, %s41
      %p43 = scmp.eq.s32.totalorder %s42, 0
      %s45 = sadd.s32 %s44, 1
      %s46 = scalar_select %p43, %s44, %s45
      %p49 = pneg %p43
      %p50 = scmp.eq.s32.totalorder %s20, 1
      %p51 = por %p49, %p50
      %p52 = scmp.ne.s32.totalorder %s44, %s47
      %p53 = scmp.eq.s32.totalorder %s20, 0
      %p54 = por %p52, %p53
      %p55 = scmp.ne.s32.totalorder %s44, %s47
      %p56 = scmp.eq.s32.totalorder %s25, 1
      %p57 = por %p55, %p56
      %p58 = scmp.ne.s32.totalorder %s47, %s48
      %p59 = scmp.eq.s32.totalorder %s25, 0
      %p60 = por %p58, %p59
      %p61 = scmp.ne.s32.totalorder %s47, %s48
      %p62 = scmp.eq.s32.totalorder %s26, 1
      %p63 = por %p61, %p62
      %p65 = scmp.ne.s32.totalorder %s48, %s64
      %p66 = scmp.eq.s32.totalorder %s26, 0
      %p67 = por %p65, %p66
      %s69 = sadd.s32 %s68, 1
      %p72 = scmp.eq.s32.totalorder %s20, 1
      %p73 = scmp.ne.s32.totalorder %s68, %s70
      %p74 = scmp.eq.s32.totalorder %s20, 0
      %p75 = por %p73, %p74
      %p76 = scmp.ne.s32.totalorder %s68, %s70
      %p77 = scmp.eq.s32.totalorder %s25, 1
      %p78 = por %p76, %p77
      %p79 = scmp.ne.s32.totalorder %s70, %s71
      %p80 = scmp.eq.s32.totalorder %s25, 0
      %p81 = por %p79, %p80
      %p82 = scmp.ne.s32.totalorder %s70, %s71
      %p83 = scmp.eq.s32.totalorder %s26, 1
      %p84 = por %p82, %p83
      %p86 = scmp.ne.s32.totalorder %s71, %s85
      %p87 = scmp.eq.s32.totalorder %s26, 0
      %p88 = por %p86, %p87
      %s90 = sadd.s32 %s89, 1
      %p93 = scmp.eq.s32.totalorder %s20, 1
      %p94 = scmp.ne.s32.totalorder %s89, %s91
      %p95 = scmp.eq.s32.totalorder %s20, 0
      %p96 = por %p94, %p95
      %p97 = scmp.ne.s32.totalorder %s89, %s91
      %p98 = scmp.eq.s32.totalorder %s25, 1
      %p99 = por %p97, %p98
      %p100 = scmp.ne.s32.totalorder %s91, %s92
      %p101 = scmp.eq.s32.totalorder %s25, 0
      %p102 = por %p100, %p101
      %p103 = scmp.ne.s32.totalorder %s91, %s92
      %p104 = scmp.eq.s32.totalorder %s26, 1
      %p105 = por %p103, %p104
      %p107 = scmp.ne.s32.totalorder %s92, %s106
      %p108 = scmp.eq.s32.totalorder %s26, 0
      %p109 = por %p107, %p108
      %s111 = sadd.s32 %s110, 1
      %p114 = scmp.eq.s32.totalorder %s20, 1
      %p115 = scmp.ne.s32.totalorder %s110, %s112
      %p116 = scmp.eq.s32.totalorder %s20, 0
      %p117 = por %p115, %p116
      %p118 = scmp.ne.s32.totalorder %s110, %s112
      %p119 = scmp.eq.s32.totalorder %s25, 1
      %p120 = por %p118, %p119
      %p121 = scmp.ne.s32.totalorder %s112, %s113
      %p122 = scmp.eq.s32.totalorder %s25, 0
      %p123 = por %p121, %p122
      %p124 = scmp.ne.s32.totalorder %s112, %s113
      %p125 = scmp.eq.s32.totalorder %s26, 1
      %p126 = por %p124, %p125
      %p128 = scmp.ne.s32.totalorder %s113, %s127
      %p129 = scmp.eq.s32.totalorder %s26, 0
      %p130 = por %p128, %p129
      %s132 = sadd.s32 %s131, 1
      %p135 = scmp.eq.s32.totalorder %s20, 1
      %p136 = scmp.ne.s32.totalorder %s131, %s133
      %p137 = scmp.eq.s32.totalorder %s20, 0
      %p138 = por %p136, %p137
      %p139 = scmp.ne.s32.totalorder %s131, %s133
      %p140 = scmp.eq.s32.totalorder %s25, 1
      %p141 = por %p139, %p140
      %p142 = scmp.ne.s32.totalorder %s133, %s134
      %p143 = scmp.eq.s32.totalorder %s25, 0
      %p144 = por %p142, %p143
      %p145 = scmp.ne.s32.totalorder %s133, %s134
      %p146 = scmp.eq.s32.totalorder %s26, 1
      %p147 = por %p145, %p146
      %p149 = scmp.ne.s32.totalorder %s134, %s148
      %p150 = scmp.eq.s32.totalorder %s26, 0
      %p151 = por %p149, %p150
      %s152 = ssub.s32 %s27, %s39
      %s153 = ssub.s32 %s28, %s35
      %s154 = sor.u32 %s152, %s153
      %p155 = scmp.eq.s32.totalorder %s154, 0
      %s157 = sadd.s32 %s156, 1
      %s158 = scalar_select %p155, %s156, %s157
      %p161 = pneg %p155
      %p162 = scmp.eq.s32.totalorder %s20, 1
      %p163 = por %p161, %p162
      %p164 = scmp.ne.s32.totalorder %s156, %s159
      %p165 = scmp.eq.s32.totalorder %s20, 0
      %p166 = por %p164, %p165
      %p167 = scmp.ne.s32.totalorder %s156, %s159
      %p168 = scmp.eq.s32.totalorder %s25, 1
      %p169 = por %p167, %p168
      %p170 = scmp.ne.s32.totalorder %s159, %s160
      %p171 = scmp.eq.s32.totalorder %s25, 0
      %p172 = por %p170, %p171
      %p173 = scmp.ne.s32.totalorder %s159, %s160
      %p174 = scmp.eq.s32.totalorder %s26, 1
      %p175 = por %p173, %p174
      %p177 = scmp.ne.s32.totalorder %s160, %s176
      %p178 = scmp.eq.s32.totalorder %s26, 0
      %p179 = por %p177, %p178
      %p180 = scmp.le.s32.totalorder 1, %s20
      %p181 = scmp.lt.s32.totalorder %s20, 3
      %p182 = pnand %p180, %p181
      %p183 = pneg %p182
      // Predicated region
      $region9: #{tpu_custom_call.1} parent=5 // pred_check
        _
      $region10: #{tpu_custom_call.1} parent=5 // pred_check_branch
        %185 = sbr.rel (%p182) target = $region12
      $region11: #{tpu_custom_call.1} parent=5 // pred_region
        %s186 = ssub.s32 %s20, 1
        // Predicated region
        $region13: #{tpu_custom_call.1} parent=11 // pred_check
          %p187 = pneg %p81
        $region14: #{tpu_custom_call.1} parent=11 // pred_check_branch
          %189 = sbr.rel (%p187) target = $region16
        $region15: #{tpu_custom_call.1} parent=11 // pred_region
          %s191 = ssub.s32 16, 16
          %192 = vsyncadd [#allocation6], %s191
          %s194 = sshll.u32 %s1, 4
          %s195 = int_to_ptr.vmem [resolvable:$true] %s194
          %197 = dma.vmem_to_smem %s195, 16, [#allocation7], [#allocation6]
        $region16: #{tpu_custom_call.1} parent=11 // pred_fallthru
          _
        // Predicated region
        $region17: #{tpu_custom_call.1} parent=11 // pred_check
          %p198 = pneg %p102
        $region18: #{tpu_custom_call.1} parent=11 // pred_check_branch
          %200 = sbr.rel (%p198) target = $region20
        $region19: #{tpu_custom_call.1} parent=11 // pred_region
          %s202 = ssub.s32 16, 16
          %203 = vsyncadd [#allocation9], %s202
          %s205 = sshll.u32 %s2, 4
          %s206 = int_to_ptr.vmem [resolvable:$true] %s205
          %208 = dma.vmem_to_smem %s206, 16, [#allocation8], [#allocation9]
        $region20: #{tpu_custom_call.1} parent=11 // pred_fallthru
          _
        // Predicated region
        $region21: #{tpu_custom_call.1} parent=11 // pred_check
          %p209 = pneg %p123
        $region22: #{tpu_custom_call.1} parent=11 // pred_check_branch
          %211 = sbr.rel (%p209) target = $region24
        $region23: #{tpu_custom_call.1} parent=11 // pred_region
          %s213 = ssub.s32 16, 16
          %214 = vsyncadd [#allocation9], %s213
          %s216 = sshll.u32 %s3, 4
          %s217 = int_to_ptr.vmem [resolvable:$true] %s216
          %219 = dma.vmem_to_smem %s217, 16, [#allocation10], [#allocation9]
        $region24: #{tpu_custom_call.1} parent=11 // pred_fallthru
          _
        // Predicated region
        $region25: #{tpu_custom_call.1} parent=11 // pred_check
          %p220 = pneg %p144
        $region26: #{tpu_custom_call.1} parent=11 // pred_check_branch
          %222 = sbr.rel (%p220) target = $region28
        $region27: #{tpu_custom_call.1} parent=11 // pred_region
          _
        $region28: #{tpu_custom_call.1} parent=11 // pred_fallthru
          _
      $region12: #{tpu_custom_call.1} parent=5 // pred_fallthru
        _
      %p223 = scmp.lt.s32.totalorder %s20, 2
      // Predicated region
      $region29: #{tpu_custom_call.1} parent=5 // pred_check
        %p224 = pneg %p223
      $region30: #{tpu_custom_call.1} parent=5 // pred_check_branch
        %226 = sbr.rel (%p224) target = $region32
      $region31: #{tpu_custom_call.1} parent=5 // pred_region
        // Predicated region
        $region33: #{tpu_custom_call.1} parent=31 // pred_check
          %p227 = pneg %p54
        $region34: #{tpu_custom_call.1} parent=31 // pred_check_branch
          %229 = sbr.rel (%p227) target = $region36
        $region35: #{tpu_custom_call.1} parent=31 // pred_region
          %s230 = sand.u32 %s44, 1
          %s231 = scalar_lea.sflag [#allocation4], %s230
          %s232 = sand.u32 %s44, 1
          %s233 = smul.addr %s232, 8
          %s234 = scalar_lea.vmem [#allocation3], %s233
          %s236 = ssub.s32 128, 128
          %237 = vsyncadd %s231, %s236
          %s238 = smul.addr %s27, 4
          %s239 = sadd.s32 %s28, %s238
          %s240 = smul.addr %s239, 32
          %s241 = scalar_lea.hbm %s0, %s240
          %s242 = sshll.u32 %s234, 4
          %s243 = int_to_ptr.vmem [resolvable:$true] %s242
          %248 = dma.hbm_to_vmem [thread:$0]  %s241, 128, %s243, %s231, 32, 32, 2
        $region36: #{tpu_custom_call.1} parent=31 // pred_fallthru
          _
      $region32: #{tpu_custom_call.1} parent=5 // pred_fallthru
        _
      %p249 = scmp.le.s32.totalorder 1, %s20
      %p250 = scmp.lt.s32.totalorder %s20, 3
      %p251 = pnand %p249, %p250
      %p252 = pneg %p251
      // Predicated region
      $region37: #{tpu_custom_call.1} parent=5 // pred_check
        _
      $region38: #{tpu_custom_call.1} parent=5 // pred_check_branch
        %254 = sbr.rel (%p251) target = $region40
      $region39: #{tpu_custom_call.1} parent=5 // pred_region
        %s255 = ssub.s32 %s20, 1
        %s256 = sand.u32 %s47, 1
        %s257 = scalar_lea.sflag [#allocation4], %s256
        %s258 = sand.u32 %s47, 1
        %s259 = smul.addr %s258, 8
        %s260 = scalar_lea.vmem [#allocation3], %s259
        // Predicated region
        $region41: #{tpu_custom_call.1} parent=39 // pred_check
          %p261 = pneg %p60
        $region42: #{tpu_custom_call.1} parent=39 // pred_check_branch
          %263 = sbr.rel (%p261) target = $region44
        $region43: #{tpu_custom_call.1} parent=39 // pred_region
          %264 = dma.done %s257, 128
        $region44: #{tpu_custom_call.1} parent=39 // pred_fallthru
          _
        // Predicated region
        $region45: #{tpu_custom_call.1} parent=39 // pred_check
          %p265 = pneg %p81
        $region46: #{tpu_custom_call.1} parent=39 // pred_check_branch
          %267 = sbr.rel (%p265) target = $region48
        $region47: #{tpu_custom_call.1} parent=39 // pred_region
          %268 = dma.done [#allocation6], 16
        $region48: #{tpu_custom_call.1} parent=39 // pred_fallthru
          _
        // Predicated region
        $region49: #{tpu_custom_call.1} parent=39 // pred_check
          %p269 = pneg %p102
        $region50: #{tpu_custom_call.1} parent=39 // pred_check_branch
          %271 = sbr.rel (%p269) target = $region52
        $region51: #{tpu_custom_call.1} parent=39 // pred_region
          %272 = dma.done [#allocation9], 16
        $region52: #{tpu_custom_call.1} parent=39 // pred_fallthru
          _
        // Predicated region
        $region53: #{tpu_custom_call.1} parent=39 // pred_check
          %p273 = pneg %p123
        $region54: #{tpu_custom_call.1} parent=39 // pred_check_branch
          %275 = sbr.rel (%p273) target = $region56
        $region55: #{tpu_custom_call.1} parent=39 // pred_region
          %276 = dma.done [#allocation9], 16
        $region56: #{tpu_custom_call.1} parent=39 // pred_fallthru
          _
        %277 = sfence
        %s278 = sand.u32 %s47, 1
        %s279 = scalar_lea.sflag [#allocation4], %s278
        %s280 = sand.u32 %s47, 1
        %s281 = smul.addr %s280, 8
        %s282 = scalar_lea.vmem [#allocation3], %s281
        %p283 = pneg %p60
        %p284 = pneg %p57
        %p285 = pneg %p81
        %p286 = pneg %p78
        %p287 = pneg %p102
        %p288 = pneg %p99
        %p289 = pneg %p123
        %p290 = pneg %p120
        %p291 = pneg %p144
        %p292 = pneg %p141
        %p293 = pneg %p172
        %p294 = pneg %p169
        %s295 = sand.u32 %s159, 1
        %s296 = scalar_lea.sflag [#allocation5], %s295
        %s297 = sand.u32 %s159, 1
        %s298 = smul.addr %s297, 2
        %s299 = scalar_lea.vmem [#allocation11], %s298
        %v300 = vld [vmem:[%s260] sm:$0x3]
        %s301 = sld [smem:[#allocation7]]
        %v302 = vstv %s301
        %v303 = vmul.f32 %v300, %v302
        %s304 = scalar_lea.vmem %s260, 2 [#allocation3]
        %v305 = vld [vmem:[%s304] sm:$0x3]
        %s306 = sld [smem:[#allocation7 + $0x4]]
        %v307 = vstv %s306
        %v308 = vmul.f32 %v305, %v307
        %v309 = vadd.f32 %v303, %v308
        %s310 = scalar_lea.vmem %s260, 4 [#allocation3]
        %v311 = vld [vmem:[%s310] sm:$0x3]
        %s312 = sld [smem:[#allocation7 + $0x8]]
        %v313 = vstv %s312
        %v314 = vmul.f32 %v311, %v313
        %v315 = vadd.f32 %v309, %v314
        %s316 = scalar_lea.vmem %s260, 6 [#allocation3]
        %v317 = vld [vmem:[%s316] sm:$0x3]
        %s318 = sld [smem:[#allocation7 + $0xc]]
        %v319 = vstv %s318
        %v320 = vmul.f32 %v317, %v319
        %v321 = vadd.f32 %v315, %v320
        %s322 = sld [smem:[#allocation8]]
        %v323 = vstv %s322
        %vm324 = vcmp.ge.f32.partialorder %v321, %v323
        %s325 = sld [smem:[#allocation10]]
        %v326 = vstv %s325
        %v327 = vsel %vm324, %v326, 0.0
        %s328 = sld [smem:[#allocation7 + $0x1]]
        %v329 = vstv %s328
        %v330 = vmul.f32 %v300, %v329
        %s331 = sld [smem:[#allocation7 + $0x5]]
        %v332 = vstv %s331
        %v333 = vmul.f32 %v305, %v332
        %v334 = vadd.f32 %v330, %v333
        %s335 = sld [smem:[#allocation7 + $0x9]]
        %v336 = vstv %s335
        %v337 = vmul.f32 %v311, %v336
        %v338 = vadd.f32 %v334, %v337
        %s339 = sld [smem:[#allocation7 + $0xd]]
        %v340 = vstv %s339
        %v341 = vmul.f32 %v317, %v340
        %v342 = vadd.f32 %v338, %v341
        %s343 = sld [smem:[#allocation8 + $0x1]]
        %v344 = vstv %s343
        %vm345 = vcmp.ge.f32.partialorder %v342, %v344
        %s346 = sld [smem:[#allocation10 + $0x1]]
        %v347 = vstv %s346
        %v348 = vsel %vm345, %v347, 0.0
        %v349 = vadd.f32 %v327, %v348
        %s350 = sld [smem:[#allocation7 + $0x2]]
        %v351 = vstv %s350
        %v352 = vmul.f32 %v300, %v351
        %s353 = sld [smem:[#allocation7 + $0x6]]
        %v354 = vstv %s353
        %v355 = vmul.f32 %v305, %v354
        %v356 = vadd.f32 %v352, %v355
        %s357 = sld [smem:[#allocation7 + $0xa]]
        %v358 = vstv %s357
        %v359 = vmul.f32 %v311, %v358
        %v360 = vadd.f32 %v356, %v359
        %s361 = sld [smem:[#allocation7 + $0xe]]
        %v362 = vstv %s361
        %v363 = vmul.f32 %v317, %v362
        %v364 = vadd.f32 %v360, %v363
        %s365 = sld [smem:[#allocation8 + $0x2]]
        %v366 = vstv %s365
        %vm367 = vcmp.ge.f32.partialorder %v364, %v366
        %s368 = sld [smem:[#allocation10 + $0x2]]
        %v369 = vstv %s368
        %v370 = vsel %vm367, %v369, 0.0
        %v371 = vadd.f32 %v349, %v370
        %s372 = sld [smem:[#allocation7 + $0x3]]
        %v373 = vstv %s372
        %v374 = vmul.f32 %v300, %v373
        %s375 = sld [smem:[#allocation7 + $0x7]]
        %v376 = vstv %s375
        %v377 = vmul.f32 %v305, %v376
        %v378 = vadd.f32 %v374, %v377
        %s379 = sld [smem:[#allocation7 + $0xb]]
        %v380 = vstv %s379
        %v381 = vmul.f32 %v311, %v380
        %v382 = vadd.f32 %v378, %v381
        %s383 = sld [smem:[#allocation7 + $0xf]]
        %v384 = vstv %s383
        %v385 = vmul.f32 %v317, %v384
        %v386 = vadd.f32 %v382, %v385
        %s387 = sld [smem:[#allocation8 + $0x3]]
        %v388 = vstv %s387
        %vm389 = vcmp.ge.f32.partialorder %v386, %v388
        %s390 = sld [smem:[#allocation10 + $0x3]]
        %v391 = vstv %s390
        %v392 = vsel %vm389, %v391, 0.0
        %v393 = vadd.f32 %v371, %v392
        %s394 = sld [smem:[#allocation2]]
        %v395 = vstv %s394
        %v396 = vadd.f32 %v393, %v395
        %v397 = vsub.f32 0.0, %v396
        %v398 = vmul.f32 %v397, 1.442695
        %v399 = vpow.pop %v398
        %v400 = vadd.f32 %v399, 1.0
        %v401 = vrcp.pop %v400
        %402 = vst [vmem:[%s299] sm:$0x3] %v401
        %s403 = sand.u32 %s159, 1
        %s404 = scalar_lea.sflag [#allocation5], %s403
        %s405 = sand.u32 %s159, 1
        %s406 = smul.addr %s405, 2
        %s407 = scalar_lea.vmem [#allocation11], %s406
        // Predicated region
        $region57: #{tpu_custom_call.1} parent=39 // pred_check
          %p408 = pneg %p169
        $region58: #{tpu_custom_call.1} parent=39 // pred_check_branch
          %410 = sbr.rel (%p408) target = $region60
        $region59: #{tpu_custom_call.1} parent=39 // pred_region
          %s412 = ssub.s32 32, 32
          %413 = vsyncadd %s404, %s412
          %s414 = sadd.s32 %s30, %s29
          %s415 = smul.addr %s414, 32
          %s416 = scalar_lea.hbm %s5, %s415
          %s418 = sshll.u32 %s407, 4
          %s419 = int_to_ptr.vmem [resolvable:$true] %s418
          %421 = dma.vmem_to_hbm [thread:$0]  %s419, 32, %s416, %s404
        $region60: #{tpu_custom_call.1} parent=39 // pred_fallthru
          _
      $region40: #{tpu_custom_call.1} parent=5 // pred_fallthru
        _
      %p422 = scmp.le.s32.totalorder 2, %s20
      // Predicated region
      $region61: #{tpu_custom_call.1} parent=5 // pred_check
        %p423 = pneg %p422
      $region62: #{tpu_custom_call.1} parent=5 // pred_check_branch
        %425 = sbr.rel (%p423) target = $region64
      $region63: #{tpu_custom_call.1} parent=5 // pred_region
        %s426 = ssub.s32 %s20, 2
        // Predicated region
        $region65: #{tpu_custom_call.1} parent=63 // pred_check
          %p427 = pneg %p175
        $region66: #{tpu_custom_call.1} parent=63 // pred_check_branch
          %429 = sbr.rel (%p427) target = $region68
        $region67: #{tpu_custom_call.1} parent=63 // pred_region
          %s430 = sand.u32 %s160, 1
          %s431 = scalar_lea.sflag [#allocation5], %s430
          %s432 = sand.u32 %s160, 1
          %s433 = smul.addr %s432, 2
          %s434 = scalar_lea.vmem [#allocation11], %s433
          %435 = dma.done %s431, 32
        $region68: #{tpu_custom_call.1} parent=63 // pred_fallthru
          _
      $region64: #{tpu_custom_call.1} parent=5 // pred_fallthru
        _
    $region6: #{tpu_custom_call.1} parent=1 // loop_footer
      %s24 = sadd.s32 1, %s20
    $region7: #{tpu_custom_call.1} parent=1 // loop_footer_branch
      %19 = sbr.rel target = $region3
    $region8: #{tpu_custom_call.1} parent=1 // loop_exit
      _
    %436 = vsyncpa [#allocation4], 1
    %s437 = scalar_lea.sflag [#allocation4], 1
    %438 = vsyncpa %s437, 1
    %439 = vsyncpa [#allocation5], 1
    %s440 = scalar_lea.sflag [#allocation5], 1
    %441 = vsyncpa %s440, 1
    %442 = vsyncpa [#allocation6], 1
    %s443 = scalar_lea.sflag [#allocation6], 1
    %444 = vsyncpa %s443, 1
    %445 = vsyncpa [#allocation9], 1

</llo_original>
